<compile_context>
chip_gen: v7x
topology: tpu7x:2x2x1
jax: 0.10.0
libtpu: 0.0.40
codegen_flags: <defaults>
</compile_context>

<pallas_src>
import jax
import jax.numpy as jnp
import numpy as np
from jax.experimental import pallas as pl
from jax.experimental.pallas import tpu as pltpu

# ---- module hyper-parameters -------------------------------------------------
STATE_DIM = 10
DISCRETE_ACTION_DIM = 6
PARAMETER_ACTION_DIM = 6

SA_DIM = STATE_DIM + DISCRETE_ACTION_DIM * 10 + PARAMETER_ACTION_DIM   # 76
SA_PAD = 128            # sa zero-padded to one full lane group
HIDDEN = 256
Q_PAD = 128             # fused q1/q2 output slab width (lane-dense stores)

_VMEM = pltpu.MemorySpace.VMEM


def _round_up(x, m):
    return (x + m - 1) // m * m


# ------------------------------ Pallas kernels ---------------------------------
def _critic_kernel(sa_ref,
                   w14_ref, b14_ref,
                   w2_ref, b2_ref,
                   w5_ref, b5_ref,
                   wq_ref, bq_ref,
                   q_ref):
    """One batch tile of the twin-Q critic.

    sa_ref  : (TB, 128)   zero-padded [state | disc | par], bf16 (or f32)
    w14     : (128, 512)  [l1 | l4] fused, rows >= SA_DIM are zero
    w2 / w5 : (256, 256)
    wq      : (512, 128)  rows 0:256 col0 = W3, rows 256:512 col1 = W6
    q_ref   : (TB, 128)   col 0 = q1, col 1 = q2 (lane-dense output slab)
    """
    wdt = w14_ref.dtype

    # fused layer 1: relu(sa @ [W1 | W4] + [b1 | b4]) -> (TB, 512) f32
    h1 = jnp.maximum(
        jnp.dot(sa_ref[...], w14_ref[...],
                preferred_element_type=jnp.float32) + b14_ref[...], 0.0)

    # layer 2: two lane-aligned 256-wide halves (256 % 128 == 0 => free slices)
    h2a = jnp.maximum(
        jnp.dot(h1[:, :HIDDEN].astype(wdt), w2_ref[...],
                preferred_element_type=jnp.float32) + b2_ref[...], 0.0)
    h2b = jnp.maximum(
        jnp.dot(h1[:, HIDDEN:].astype(wdt), w5_ref[...],
                preferred_element_type=jnp.float32) + b5_ref[...], 0.0)

    # fused layer 3: one stacked dot, lane-dense (TB, 128) slab
    h2 = jnp.concatenate([h2a.astype(wdt), h2b.astype(wdt)], axis=-1)  # (TB, 512)
    q_ref[...] = (jnp.dot(h2, wq_ref[...], preferred_element_type=jnp.float32)
                  + bq_ref[...])


def _q1_kernel(sa_ref, w1_ref, b1_ref, w2_ref, b2_ref, wq1_ref, bq1_ref, q_ref):
    """Q1-only tile (actor-update path): single tower, half the FLOPs."""
    wdt = w1_ref.dtype
    h1 = jnp.maximum(
        jnp.dot(sa_ref[...], w1_ref[...],
                preferred_element_type=jnp.float32) + b1_ref[...], 0.0)
    h2 = jnp.maximum(
        jnp.dot(h1.astype(wdt), w2_ref[...],
                preferred_element_type=jnp.float32) + b2_ref[...], 0.0)
    q_ref[...] = (jnp.dot(h2.astype(wdt), wq1_ref[...],
                          preferred_element_type=jnp.float32) + bq1_ref[...])


# -------------------------------- launcher -------------------------------------
def _launch(kernel, sa, weights, *, block_b, min_tiles, interpret):
    """Tile the batch, run `kernel` over a 1-D parallel grid, return (B, 128)."""
    B = sa.shape[0]
    row_align = 16 if sa.dtype == jnp.bfloat16 else 8

    # Even tiling: tiles divide B nearly evenly instead of padding up to a
    # fixed block size (avoids a pathological mostly-zero last tile).
    n_tiles = max(pl.cdiv(B, block_b), min_tiles)
    if min_tiles > 1:
        n_tiles = _round_up(n_tiles, 2)       # even grid -> balanced v7x split
    tb = _round_up(pl.cdiv(B, n_tiles), row_align)
    b_pad = _round_up(B, tb)
    grid = (b_pad // tb,)
    if b_pad != B:
        sa = jnp.pad(sa, ((0, b_pad - B), (0, 0)))   # mask-free last tile

    def tile_spec(width):
        return pl.BlockSpec((tb, width), lambda i: (i, 0), memory_space=_VMEM)

    def rep_spec(arr):
        nd = arr.ndim
        return pl.BlockSpec(arr.shape, lambda i, nd=nd: (0,) * nd,
                            memory_space=_VMEM)

    out = pl.pallas_call(
        kernel,
        out_shape=jax.ShapeDtypeStruct((b_pad, Q_PAD), jnp.float32),
        grid_spec=pltpu.PrefetchScalarGridSpec(
            num_scalar_prefetch=0,
            grid=grid,
            in_specs=[tile_spec(SA_PAD)] + [rep_spec(w) for w in weights],
            out_specs=tile_spec(Q_PAD),
        ),
        compiler_params=pltpu.CompilerParams(
            dimension_semantics=("parallel",),
            vmem_limit_bytes=32 * 1024 * 1024,   # safe on v5e (16 MiB default)
        ),
        interpret=interpret,
    )(sa, *weights)
    return out[:B]


def _build_sa(state, discrete_action, parameter_action, dtype):
    sa = jnp.concatenate([state, discrete_action, parameter_action],
                         axis=1).astype(dtype)
    return jnp.pad(sa, ((0, 0), (0, SA_PAD - SA_DIM)))        # lane-dense input


# -------------------------------- wrappers --------------------------------------
def critic_forward(state, discrete_action, parameter_action, packed,
                   *, block_b=2048, min_tiles=1, interpret=False):
    """Critic.forward -> (q1, q2), each (B, 1).

    On v7x pass min_tiles=2 so the parallel batch grid feeds both TensorCores.
    """
    sa = _build_sa(state, discrete_action, parameter_action, packed["w14"].dtype)
    weights = (packed["w14"], packed["b14"],
               packed["w2"], packed["b2"],
               packed["w5"], packed["b5"],
               packed["wq"], packed["bq"])
    out = _launch(_critic_kernel, sa, weights,
                  block_b=block_b, min_tiles=min_tiles, interpret=interpret)
    return out[:, 0:1], out[:, 1:2]


def critic_q1(state, discrete_action, parameter_action, packed,
              *, block_b=2048, min_tiles=1, interpret=False):
    """Critic.Q1 -> q1 (B, 1).  Dedicated single-tower kernel."""
    sa = _build_sa(state, discrete_action, parameter_action, packed["w1"].dtype)
    weights = (packed["w1"], packed["b1"],
               packed["w2"], packed["b2"],
               packed["wq1"], packed["bq1"])
    out = _launch(_q1_kernel, sa, weights,
                  block_b=block_b, min_tiles=min_tiles, interpret=interpret)
    return out[:, 0:1]


# ---------------------------- parameter handling ------------------------------
def _linear(key, fan_in, fan_out):
    kw, kb = jax.random.split(key)
    bound = 1.0 / np.sqrt(fan_in)
    w = jax.random.uniform(kw, (fan_in, fan_out), jnp.float32, -bound, bound)
    b = jax.random.uniform(kb, (1, fan_out), jnp.float32, -bound, bound)
    return w, b


def init_params(key):
    """Per-layer params, stored as (in_features, out_features) so y = x @ W + b."""
    ks = jax.random.split(key, 6)
    p = {}
    p["w1"], p["b1"] = _linear(ks[0], SA_DIM, HIDDEN)
    p["w2"], p["b2"] = _linear(ks[1], HIDDEN, HIDDEN)
    p["w3"], p["b3"] = _linear(ks[2], HIDDEN, 1)
    p["w4"], p["b4"] = _linear(ks[3], SA_DIM, HIDDEN)
    p["w5"], p["b5"] = _linear(ks[4], HIDDEN, HIDDEN)
    p["w6"], p["b6"] = _linear(ks[5], HIDDEN, 1)
    return p


def pack_params(p, weight_dtype=jnp.bfloat16):
    """Fuse + lane-pad the per-layer weights into the kernel layout.

    Default is bf16 weights (MXU-native, f32 accumulation kept in the kernel).
    Use weight_dtype=jnp.float32 for bit-tight checks.  Padding rows/cols are
    exactly zero so the fused slabs are exact.
    """
    w1 = jnp.zeros((SA_PAD, HIDDEN), jnp.float32).at[:SA_DIM].set(p["w1"])
    w4 = jnp.zeros((SA_PAD, HIDDEN), jnp.float32).at[:SA_DIM].set(p["w4"])
    w14 = jnp.concatenate([w1, w4], axis=1)                    # (128, 512)
    b14 = jnp.concatenate([p["b1"], p["b4"]], axis=1)          # (1, 512)

    # stacked layer-3 slab: rows 0:256 col0 = W3, rows 256:512 col1 = W6
    wq = jnp.zeros((2 * HIDDEN, Q_PAD), jnp.float32)
    wq = wq.at[:HIDDEN, 0:1].set(p["w3"]).at[HIDDEN:, 1:2].set(p["w6"])
    bq = jnp.zeros((1, Q_PAD), jnp.float32)
    bq = bq.at[:, 0:1].set(p["b3"]).at[:, 1:2].set(p["b6"])

    # Q1-only operands
    wq1 = jnp.zeros((HIDDEN, Q_PAD), jnp.float32).at[:, 0:1].set(p["w3"])
    bq1 = jnp.zeros((1, Q_PAD), jnp.float32).at[:, 0:1].set(p["b3"])

    return {
        "w14": w14.astype(weight_dtype), "b14": b14,
        "w2": p["w2"].astype(weight_dtype), "b2": p["b2"],
        "w5": p["w5"].astype(weight_dtype), "b5": p["b5"],
        "wq": wq.astype(weight_dtype), "bq": bq,
        "w1": w1.astype(weight_dtype), "b1": p["b1"],
        "wq1": wq1.astype(weight_dtype), "bq1": bq1,
    }


# -------------------------- pure-JAX reference check --------------------------
def critic_reference(state, disc, par, p):
    hp = jax.lax.Precision.HIGHEST
    sa = jnp.concatenate([state, disc, par], axis=1)
    q1 = jax.nn.relu(jnp.dot(sa, p["w1"], precision=hp) + p["b1"])
    q1 = jax.nn.relu(jnp.dot(q1, p["w2"], precision=hp) + p["b2"])
    q1 = jnp.dot(q1, p["w3"], precision=hp) + p["b3"]
    q2 = jax.nn.relu(jnp.dot(sa, p["w4"], precision=hp) + p["b4"])
    q2 = jax.nn.relu(jnp.dot(q2, p["w5"], precision=hp) + p["b5"])
    q2 = jnp.dot(q2, p["w6"], precision=hp) + p["b6"]
    return q1, q2


# ----------------------------------- main --------------------------------------
if __name__ == "__main__":
    B = 2
    key = jax.random.PRNGKey(0)
    kp, ks, kd, ka = jax.random.split(key, 4)

    params = init_params(kp)

    state = jax.random.normal(ks, (B, STATE_DIM), jnp.float32)
    disc = jax.random.normal(kd, (B, DISCRETE_ACTION_DIM * 10), jnp.float32)
    par = jax.random.normal(ka, (B, PARAMETER_ACTION_DIM), jnp.float32)

    r1, r2 = critic_reference(state, disc, par, params)

    # ---- default perf path: bf16 weights/activations, f32 accumulation -------
    packed_bf16 = pack_params(params)                         # bf16 default
    q1, q2 = jax.block_until_ready(critic_forward(state, disc, par, packed_bf16))
    np.testing.assert_allclose(np.asarray(q1), np.asarray(r1), rtol=5e-2, atol=5e-2)
    np.testing.assert_allclose(np.asarray(q2), np.asarray(r2), rtol=5e-2, atol=5e-2)

    q1_only = jax.block_until_ready(critic_q1(state, disc, par, packed_bf16))
    np.testing.assert_allclose(np.asarray(q1_only), np.asarray(r1),
                               rtol=5e-2, atol=5e-2)

    # ---- f32 path: tight structural check -------------------------------------
    packed_f32 = pack_params(params, weight_dtype=jnp.float32)
    q1f, q2f = jax.block_until_ready(critic_forward(state, disc, par, packed_f32))
    np.testing.assert_allclose(np.asarray(q1f), np.asarray(r1), rtol=5e-3, atol=5e-3)
    np.testing.assert_allclose(np.asarray(q2f), np.asarray(r2), rtol=5e-3, atol=5e-3)

    print("KERNEL_OK")
</pallas_src>

<mosaic_0001>
module attributes {stable_mosaic.version = 11 : i64} {
  func.func @_critic_kernel(%arg0: i32, %arg1: memref<16x128xbf16, #tpu.memory_space<vmem>>, %arg2: memref<128x512xbf16, #tpu.memory_space<vmem>>, %arg3: memref<1x512xf32, #tpu.memory_space<vmem>>, %arg4: memref<256x256xbf16, #tpu.memory_space<vmem>>, %arg5: memref<1x256xf32, #tpu.memory_space<vmem>>, %arg6: memref<256x256xbf16, #tpu.memory_space<vmem>>, %arg7: memref<1x256xf32, #tpu.memory_space<vmem>>, %arg8: memref<512x128xbf16, #tpu.memory_space<vmem>>, %arg9: memref<1x128xf32, #tpu.memory_space<vmem>>, %arg10: memref<16x128xf32, #tpu.memory_space<vmem>>) attributes {dimension_semantics = [#tpu.dimension_semantics<parallel>], iteration_bounds = array<i64: 1>, scalar_prefetch = 0 : i64, scratch_operands = 0 : i64, tpu.core_type = #tpu.core_type<tc>, window_params = [{transform_indices = @transform_0, window_bounds = array<i64: 16, 128>}, {pipeline_mode = #tpu.pipeline_mode<synchronous>, transform_indices = @transform_1, window_bounds = array<i64: 128, 512>}, {pipeline_mode = #tpu.pipeline_mode<synchronous>, transform_indices = @transform_2, window_bounds = array<i64: 1, 512>}, {pipeline_mode = #tpu.pipeline_mode<synchronous>, transform_indices = @transform_3, window_bounds = array<i64: 256, 256>}, {pipeline_mode = #tpu.pipeline_mode<synchronous>, transform_indices = @transform_4, window_bounds = array<i64: 1, 256>}, {pipeline_mode = #tpu.pipeline_mode<synchronous>, transform_indices = @transform_5, window_bounds = array<i64: 256, 256>}, {pipeline_mode = #tpu.pipeline_mode<synchronous>, transform_indices = @transform_6, window_bounds = array<i64: 1, 256>}, {pipeline_mode = #tpu.pipeline_mode<synchronous>, transform_indices = @transform_7, window_bounds = array<i64: 512, 128>}, {pipeline_mode = #tpu.pipeline_mode<synchronous>, transform_indices = @transform_8, window_bounds = array<i64: 1, 128>}, {transform_indices = @transform_9, window_bounds = array<i64: 16, 128>}]} {
    %c0 = arith.constant 0 : index
    %c0_0 = arith.constant 0 : index
    %0 = vector.load %arg1[%c0, %c0_0] : memref<16x128xbf16, #tpu.memory_space<vmem>>, vector<16x128xbf16>
    %c0_1 = arith.constant 0 : index
    %c0_2 = arith.constant 0 : index
    %1 = vector.load %arg2[%c0_1, %c0_2] : memref<128x512xbf16, #tpu.memory_space<vmem>>, vector<128x512xbf16>
    %cst = arith.constant dense<0.000000e+00> : vector<16x512xf32>
    %2 = tpu.matmul %0, %1, %cst {dimension_numbers = #tpu.dot_dimension_numbers<[1], [0], [0], [1], [0, 0, 1, 1], [], []>} : vector<16x128xbf16>, vector<128x512xbf16>, vector<16x512xf32> -> vector<16x512xf32>
    %c0_3 = arith.constant 0 : index
    %c0_4 = arith.constant 0 : index
    %3 = vector.load %arg3[%c0_3, %c0_4] : memref<1x512xf32, #tpu.memory_space<vmem>>, vector<1x512xf32>
    %4 = vector.broadcast %3 : vector<1x512xf32> to vector<16x512xf32>
    %5 = arith.addf %2, %4 : vector<16x512xf32>
    %cst_5 = arith.constant 0.000000e+00 : f32
    %6 = vector.broadcast %cst_5 : f32 to vector<16x512xf32>
    %7 = arith.maximumf %5, %6 : vector<16x512xf32>
    %8 = vector.extract_strided_slice %7 {offsets = [0, 0], sizes = [16, 256], strides = [1, 1]} : vector<16x512xf32> to vector<16x256xf32>
    %9 = arith.truncf %8 : vector<16x256xf32> to vector<16x256xbf16>
    %c0_6 = arith.constant 0 : index
    %c0_7 = arith.constant 0 : index
    %10 = vector.load %arg4[%c0_6, %c0_7] : memref<256x256xbf16, #tpu.memory_space<vmem>>, vector<256x256xbf16>
    %cst_8 = arith.constant dense<0.000000e+00> : vector<16x256xf32>
    %11 = tpu.matmul %9, %10, %cst_8 {dimension_numbers = #tpu.dot_dimension_numbers<[1], [0], [0], [1], [0, 0, 1, 1], [], []>} : vector<16x256xbf16>, vector<256x256xbf16>, vector<16x256xf32> -> vector<16x256xf32>
    %c0_9 = arith.constant 0 : index
    %c0_10 = arith.constant 0 : index
    %12 = vector.load %arg5[%c0_9, %c0_10] : memref<1x256xf32, #tpu.memory_space<vmem>>, vector<1x256xf32>
    %13 = vector.broadcast %12 : vector<1x256xf32> to vector<16x256xf32>
    %14 = arith.addf %11, %13 : vector<16x256xf32>
    %cst_11 = arith.constant 0.000000e+00 : f32
    %15 = vector.broadcast %cst_11 : f32 to vector<16x256xf32>
    %16 = arith.maximumf %14, %15 : vector<16x256xf32>
    %17 = vector.extract_strided_slice %7 {offsets = [0, 256], sizes = [16, 256], strides = [1, 1]} : vector<16x512xf32> to vector<16x256xf32>
    %18 = arith.truncf %17 : vector<16x256xf32> to vector<16x256xbf16>
    %c0_12 = arith.constant 0 : index
    %c0_13 = arith.constant 0 : index
    %19 = vector.load %arg6[%c0_12, %c0_13] : memref<256x256xbf16, #tpu.memory_space<vmem>>, vector<256x256xbf16>
    %cst_14 = arith.constant dense<0.000000e+00> : vector<16x256xf32>
    %20 = tpu.matmul %18, %19, %cst_14 {dimension_numbers = #tpu.dot_dimension_numbers<[1], [0], [0], [1], [0, 0, 1, 1], [], []>} : vector<16x256xbf16>, vector<256x256xbf16>, vector<16x256xf32> -> vector<16x256xf32>
    %c0_15 = arith.constant 0 : index
    %c0_16 = arith.constant 0 : index
    %21 = vector.load %arg7[%c0_15, %c0_16] : memref<1x256xf32, #tpu.memory_space<vmem>>, vector<1x256xf32>
    %22 = vector.broadcast %21 : vector<1x256xf32> to vector<16x256xf32>
    %23 = arith.addf %20, %22 : vector<16x256xf32>
    %cst_17 = arith.constant 0.000000e+00 : f32
    %24 = vector.broadcast %cst_17 : f32 to vector<16x256xf32>
    %25 = arith.maximumf %23, %24 : vector<16x256xf32>
    %26 = arith.truncf %16 : vector<16x256xf32> to vector<16x256xbf16>
    %27 = arith.truncf %25 : vector<16x256xf32> to vector<16x256xbf16>
    %28 = tpu.concatenate %26, %27 in 1 : vector<16x256xbf16>, vector<16x256xbf16> -> vector<16x512xbf16>
    %c0_18 = arith.constant 0 : index
    %c0_19 = arith.constant 0 : index
    %29 = vector.load %arg8[%c0_18, %c0_19] : memref<512x128xbf16, #tpu.memory_space<vmem>>, vector<512x128xbf16>
    %cst_20 = arith.constant dense<0.000000e+00> : vector<16x128xf32>
    %30 = tpu.matmul %28, %29, %cst_20 {dimension_numbers = #tpu.dot_dimension_numbers<[1], [0], [0], [1], [0, 0, 1, 1], [], []>} : vector<16x512xbf16>, vector<512x128xbf16>, vector<16x128xf32> -> vector<16x128xf32>
    %c0_21 = arith.constant 0 : index
    %c0_22 = arith.constant 0 : index
    %31 = vector.load %arg9[%c0_21, %c0_22] : memref<1x128xf32, #tpu.memory_space<vmem>>, vector<1x128xf32>
    %32 = vector.broadcast %31 : vector<1x128xf32> to vector<16x128xf32>
    %33 = arith.addf %30, %32 : vector<16x128xf32>
    %c0_23 = arith.constant 0 : index
    %c0_24 = arith.constant 0 : index
    %34 = vector.load %arg10[%c0_23, %c0_24] : memref<16x128xf32, #tpu.memory_space<vmem>>, vector<16x128xf32>
    tpu.vector_store %arg10[%c0_23, %c0_24], %33 {strides = array<i32>} : memref<16x128xf32, #tpu.memory_space<vmem>>, vector<16x128xf32>,
    return
  }
  func.func @transform_0(%arg0: i32) -> (i32, i32) {
    %c0_i32 = arith.constant 0 : i32
    %c0_i32_0 = arith.constant 0 : i32
    return %arg0, %c0_i32 : i32, i32
  }
  func.func @transform_1(%arg0: i32) -> (i32, i32) {
    %c0_i32 = arith.constant 0 : i32
    %c0_i32_0 = arith.constant 0 : i32
    %c0_i32_1 = arith.constant 0 : i32
    return %c0_i32, %c0_i32_0 : i32, i32
  }
  func.func @transform_2(%arg0: i32) -> (i32, i32) {
    %c0_i32 = arith.constant 0 : i32
    %c0_i32_0 = arith.constant 0 : i32
    %c0_i32_1 = arith.constant 0 : i32
    return %c0_i32, %c0_i32_0 : i32, i32
  }
  func.func @transform_3(%arg0: i32) -> (i32, i32) {
    %c0_i32 = arith.constant 0 : i32
    %c0_i32_0 = arith.constant 0 : i32
    %c0_i32_1 = arith.constant 0 : i32
    return %c0_i32, %c0_i32_0 : i32, i32
  }
  func.func @transform_4(%arg0: i32) -> (i32, i32) {
    %c0_i32 = arith.constant 0 : i32
    %c0_i32_0 = arith.constant 0 : i32
    %c0_i32_1 = arith.constant 0 : i32
    return %c0_i32, %c0_i32_0 : i32, i32
  }
  func.func @transform_5(%arg0: i32) -> (i32, i32) {
    %c0_i32 = arith.constant 0 : i32
    %c0_i32_0 = arith.constant 0 : i32
    %c0_i32_1 = arith.constant 0 : i32
    return %c0_i32, %c0_i32_0 : i32, i32
  }
  func.func @transform_6(%arg0: i32) -> (i32, i32) {
    %c0_i32 = arith.constant 0 : i32
    %c0_i32_0 = arith.constant 0 : i32
    %c0_i32_1 = arith.constant 0 : i32
    return %c0_i32, %c0_i32_0 : i32, i32
  }
  func.func @transform_7(%arg0: i32) -> (i32, i32) {
    %c0_i32 = arith.constant 0 : i32
    %c0_i32_0 = arith.constant 0 : i32
    %c0_i32_1 = arith.constant 0 : i32
    return %c0_i32, %c0_i32_0 : i32, i32
  }
  func.func @transform_8(%arg0: i32) -> (i32, i32) {
    %c0_i32 = arith.constant 0 : i32
    %c0_i32_0 = arith.constant 0 : i32
    %c0_i32_1 = arith.constant 0 : i32
    return %c0_i32, %c0_i32_0 : i32, i32
  }
  func.func @transform_9(%arg0: i32) -> (i32, i32) {
    %c0_i32 = arith.constant 0 : i32
    %c0_i32_0 = arith.constant 0 : i32
    return %arg0, %c0_i32 : i32, i32
  }
}

</mosaic_0001>

<llo_original>
// kernel: tpu_custom_call.1
$region0: #{tpu_custom_call.1}
  #allocation0 [shape = 'u32[]', space=smem, size = 0x4, offset = 0x4, fixed_abs, tag = 'smem constant byte address 0x4 - core index']
  #allocation1 [shape = 'u32[144,128]{1,0:T(1,128)}', space=vmem, size = 0x12000, scoped, tag = 'internal scratch']
  %s0 = inlined_call_operand.hbm [shape: bf16[16,128], index: 0, kind: input, shape index: {}]
  %s1 = inlined_call_operand.hbm [shape: bf16[128,512], index: 1, kind: input, shape index: {}]
  %s2 = inlined_call_operand.vmem [shape: f32[1,512], index: 2, kind: input, shape index: {}]
  %s3 = inlined_call_operand.hbm [shape: bf16[256,256], index: 3, kind: input, shape index: {}]
  %s4 = inlined_call_operand.vmem [shape: f32[1,256], index: 4, kind: input, shape index: {}]
  %s5 = inlined_call_operand.hbm [shape: bf16[256,256], index: 5, kind: input, shape index: {}]
  %s6 = inlined_call_operand.vmem [shape: f32[1,256], index: 6, kind: input, shape index: {}]
  %s7 = inlined_call_operand.hbm [shape: bf16[512,128], index: 7, kind: input, shape index: {}]
  %s8 = inlined_call_operand.vmem [shape: f32[1,128], index: 8, kind: input, shape index: {}]
  %s9 = inlined_call_operand.hbm [shape: f32[16,128], index: 9, kind: output, shape index: {}]
  %s10 = sld [smem:[#allocation0]]
  $region66: #{tpu_custom_call.1} parent=0
    _
  %s12 = ssub.s32 1, %s10
  %s13 = scalar_select 0, %s12, %s10
  $region1: #{tpu_custom_call.1} parent=0
    #allocation2 [shape = 'u8[4096]{0}', space=vmem, size = 0x1000, scoped, tag = 'input window, operand 0, single buffered']
    #allocation3 [shape = 's32[1]{0}', space=sflag, size = 0x4, scoped, tag = 'scoped memory for tpu_custom_call.1']
    #allocation4 [shape = 's32[1]{0}', space=sflag, size = 0x4, scoped, tag = 'scoped memory for tpu_custom_call.1']
    #allocation5 [shape = 'u8[131072]{0}', space=vmem, size = 0x20000, scoped, tag = 'input window, operand 1, single buffered']
    #allocation6 [shape = 's32[1]{0}', space=sflag, size = 0x4, scoped, tag = 'scoped memory for tpu_custom_call.1']
    #allocation7 [shape = 'u8[131072]{0}', space=vmem, size = 0x20000, scoped, tag = 'input window, operand 3, single buffered']
    #allocation8 [shape = 'u8[131072]{0}', space=vmem, size = 0x20000, scoped, tag = 'input window, operand 5, single buffered']
    #allocation9 [shape = 's32[1]{0}', space=sflag, size = 0x4, scoped, tag = 'scoped memory for tpu_custom_call.1']
    #allocation10 [shape = 'u8[131072]{0}', space=vmem, size = 0x20000, scoped, tag = 'input window, operand 7, single buffered']
    #allocation11 [shape = 'u8[8192]{0}', space=vmem, size = 0x2000, scoped, tag = 'output window, operand 0, single buffered']
    %14 = vsyncpa [#allocation3], 0
    %15 = vsyncpa [#allocation6], 0
    %16 = vsyncpa [#allocation9], 0
    %17 = vsyncpa [#allocation4], 0
    // Predicated region
    $region2: #{tpu_custom_call.1} parent=1 // pred_check
      _
    $region3: #{tpu_custom_call.1} parent=1 // pred_check_branch
      %19 = sbr.rel (0) target = $region5
    $region4: #{tpu_custom_call.1} parent=1 // pred_region
      %s21 = ssub.s32 128, 128
      %22 = vsyncadd [#allocation3], %s21
      %s23 = sshll.u32 [#allocation2], 4
      %s24 = int_to_ptr.vmem [resolvable:$true] %s23
      %29 = dma.hbm_to_vmem [thread:$0]  %s0, 128, %s24, [#allocation3], 64, 64, 4
    $region5: #{tpu_custom_call.1} parent=1 // pred_fallthru
      _
    // Predicated region
    $region6: #{tpu_custom_call.1} parent=1 // pred_check
      _
    $region7: #{tpu_custom_call.1} parent=1 // pred_check_branch
      %31 = sbr.rel (0) target = $region9
    $region8: #{tpu_custom_call.1} parent=1 // pred_region
      %s33 = ssub.s32 4096, 4096
      %34 = vsyncadd [#allocation6], %s33
      %s35 = sshll.u32 [#allocation5], 4
      %s36 = int_to_ptr.vmem [resolvable:$true] %s35
      %41 = dma.hbm_to_vmem [thread:$0]  %s1, 4096, %s36, [#allocation6], 256, 256, 16
    $region9: #{tpu_custom_call.1} parent=1 // pred_fallthru
      _
    // Predicated region
    $region10: #{tpu_custom_call.1} parent=1 // pred_check
      _
    $region11: #{tpu_custom_call.1} parent=1 // pred_check_branch
      %43 = sbr.rel (0) target = $region13
    $region12: #{tpu_custom_call.1} parent=1 // pred_region
      _
    $region13: #{tpu_custom_call.1} parent=1 // pred_fallthru
      _
    // Predicated region
    $region14: #{tpu_custom_call.1} parent=1 // pred_check
      _
    $region15: #{tpu_custom_call.1} parent=1 // pred_check_branch
      %45 = sbr.rel (0) target = $region17
    $region16: #{tpu_custom_call.1} parent=1 // pred_region
      %s47 = ssub.s32 4096, 4096
      %48 = vsyncadd [#allocation6], %s47
      %s49 = sshll.u32 [#allocation7], 4
      %s50 = int_to_ptr.vmem [resolvable:$true] %s49
      %55 = dma.hbm_to_vmem [thread:$0]  %s3, 4096, %s50, [#allocation6], 128, 128, 8
    $region17: #{tpu_custom_call.1} parent=1 // pred_fallthru
      _
    // Predicated region
    $region18: #{tpu_custom_call.1} parent=1 // pred_check
      _
    $region19: #{tpu_custom_call.1} parent=1 // pred_check_branch
      %57 = sbr.rel (0) target = $region21
    $region20: #{tpu_custom_call.1} parent=1 // pred_region
      _
    $region21: #{tpu_custom_call.1} parent=1 // pred_fallthru
      _
    // Predicated region
    $region22: #{tpu_custom_call.1} parent=1 // pred_check
      _
    $region23: #{tpu_custom_call.1} parent=1 // pred_check_branch
      %59 = sbr.rel (0) target = $region25
    $region24: #{tpu_custom_call.1} parent=1 // pred_region
      %s61 = ssub.s32 4096, 4096
      %62 = vsyncadd [#allocation9], %s61
      %s63 = sshll.u32 [#allocation8], 4
      %s64 = int_to_ptr.vmem [resolvable:$true] %s63
      %69 = dma.hbm_to_vmem [thread:$0]  %s5, 4096, %s64, [#allocation9], 128, 128, 8
    $region25: #{tpu_custom_call.1} parent=1 // pred_fallthru
      _
    // Predicated region
    $region26: #{tpu_custom_call.1} parent=1 // pred_check
      _
    $region27: #{tpu_custom_call.1} parent=1 // pred_check_branch
      %71 = sbr.rel (0) target = $region29
    $region28: #{tpu_custom_call.1} parent=1 // pred_region
      _
    $region29: #{tpu_custom_call.1} parent=1 // pred_fallthru
      _
    // Predicated region
    $region30: #{tpu_custom_call.1} parent=1 // pred_check
      _
    $region31: #{tpu_custom_call.1} parent=1 // pred_check_branch
      %73 = sbr.rel (0) target = $region33
    $region32: #{tpu_custom_call.1} parent=1 // pred_region
      %s75 = ssub.s32 4096, 4096
      %76 = vsyncadd [#allocation9], %s75
      %s77 = sshll.u32 [#allocation10], 4
      %s78 = int_to_ptr.vmem [resolvable:$true] %s77
      %83 = dma.hbm_to_vmem [thread:$0]  %s7, 4096, %s78, [#allocation9], 64, 64, 4
    $region33: #{tpu_custom_call.1} parent=1 // pred_fallthru
      _
    // Predicated region
    $region34: #{tpu_custom_call.1} parent=1 // pred_check
      _
    $region35: #{tpu_custom_call.1} parent=1 // pred_check_branch
      %85 = sbr.rel (0) target = $region37
    $region36: #{tpu_custom_call.1} parent=1 // pred_region
      _
    $region37: #{tpu_custom_call.1} parent=1 // pred_fallthru
      _
    // Predicated region
    $region38: #{tpu_custom_call.1} parent=1 // pred_check
      _
    $region39: #{tpu_custom_call.1} parent=1 // pred_check_branch
      %87 = sbr.rel (0) target = $region41
    $region40: #{tpu_custom_call.1} parent=1 // pred_region
      %88 = dma.done [#allocation3], 128
    $region41: #{tpu_custom_call.1} parent=1 // pred_fallthru
      _
    // Predicated region
    $region42: #{tpu_custom_call.1} parent=1 // pred_check
      _
    $region43: #{tpu_custom_call.1} parent=1 // pred_check_branch
      %90 = sbr.rel (0) target = $region45
    $region44: #{tpu_custom_call.1} parent=1 // pred_region
      %91 = dma.done [#allocation6], 4096
    $region45: #{tpu_custom_call.1} parent=1 // pred_fallthru
      _
    // Predicated region
    $region46: #{tpu_custom_call.1} parent=1 // pred_check
      _
    $region47: #{tpu_custom_call.1} parent=1 // pred_check_branch
      %93 = sbr.rel (0) target = $region49
    $region48: #{tpu_custom_call.1} parent=1 // pred_region
      %94 = dma.done [#allocation6], 4096
    $region49: #{tpu_custom_call.1} parent=1 // pred_fallthru
      _
    // Predicated region
    $region50: #{tpu_custom_call.1} parent=1 // pred_check
      _
    $region51: #{tpu_custom_call.1} parent=1 // pred_check_branch
      %96 = sbr.rel (0) target = $region53
    $region52: #{tpu_custom_call.1} parent=1 // pred_region
      %97 = dma.done [#allocation9], 4096
    $region53: #{tpu_custom_call.1} parent=1 // pred_fallthru
      _
    // Predicated region
    $region54: #{tpu_custom_call.1} parent=1 // pred_check
      _
    $region55: #{tpu_custom_call.1} parent=1 // pred_check_branch
      %99 = sbr.rel (0) target = $region57
    $region56: #{tpu_custom_call.1} parent=1 // pred_region
      %100 = dma.done [#allocation9], 4096
    $region57: #{tpu_custom_call.1} parent=1 // pred_fallthru
      _
    %v102 = vld [vmem:[#allocation2] sm:$0xf]
    %v103 = vld [vmem:[#allocation2 + $0x4] sm:$0xf]
    %v104 = vld [vmem:[#allocation5] sm:$0xff]
    %v105 = vld [vmem:[#allocation5 + $0x8] sm:$0xff]
    %v106 = vld [vmem:[#allocation5 + $0x10] sm:$0xff]
    %v107 = vld [vmem:[#allocation5 + $0x18] sm:$0xff]
    %v108 = vld [vmem:[#allocation5 + $0x20] sm:$0xff]
    %v109 = vld [vmem:[#allocation5 + $0x28] sm:$0xff]
    %v110 = vld [vmem:[#allocation5 + $0x30] sm:$0xff]
    %v111 = vld [vmem:[#allocation5 + $0x38] sm:$0xff]
    %v112 = vld [vmem:[#allocation5 + $0x40] sm:$0xff]
    %v113 = vld [vmem:[#allocation5 + $0x48] sm:$0xff]
    %v114 = vld [vmem:[#allocation5 + $0x50] sm:$0xff]
    %v115 = vld [vmem:[#allocation5 + $0x58] sm:$0xff]
    %v116 = vld [vmem:[#allocation5 + $0x60] sm:$0xff]
    %v117 = vld [vmem:[#allocation5 + $0x68] sm:$0xff]
    %v118 = vld [vmem:[#allocation5 + $0x70] sm:$0xff]
    %v119 = vld [vmem:[#allocation5 + $0x78] sm:$0xff]
    %v120 = vld [vmem:[#allocation5 + $0x80] sm:$0xff]
    %v121 = vld [vmem:[#allocation5 + $0x88] sm:$0xff]
    %v122 = vld [vmem:[#allocation5 + $0x90] sm:$0xff]
    %v123 = vld [vmem:[#allocation5 + $0x98] sm:$0xff]
    %v124 = vld [vmem:[#allocation5 + $0xa0] sm:$0xff]
    %v125 = vld [vmem:[#allocation5 + $0xa8] sm:$0xff]
    %v126 = vld [vmem:[#allocation5 + $0xb0] sm:$0xff]
    %v127 = vld [vmem:[#allocation5 + $0xb8] sm:$0xff]
    %v128 = vld [vmem:[#allocation5 + $0xc0] sm:$0xff]
    %v129 = vld [vmem:[#allocation5 + $0xc8] sm:$0xff]
    %v130 = vld [vmem:[#allocation5 + $0xd0] sm:$0xff]
    %v131 = vld [vmem:[#allocation5 + $0xd8] sm:$0xff]
    %v132 = vld [vmem:[#allocation5 + $0xe0] sm:$0xff]
    %v133 = vld [vmem:[#allocation5 + $0xe8] sm:$0xff]
    %v134 = vld [vmem:[#allocation5 + $0xf0] sm:$0xff]
    %v135 = vld [vmem:[#allocation5 + $0xf8] sm:$0xff]
    %v136 = vld [vmem:[%s2] sm:$0xf]
    %v138 = vlaneseq
    %v139 = vshrl.u32 %v138, 7
    %v140 = vsub.s32 0, %v139
    %v141 = vrot.slane %v136, %v140
    %v142 = vlaneseq
    %v143 = vshrl.u32 %v142, 7
    %v144 = vsub.s32 1, %v143
    %v145 = vrot.slane %v136, %v144
    %v146 = vlaneseq
    %v147 = vshrl.u32 %v146, 7
    %v148 = vsub.s32 2, %v147
    %v149 = vrot.slane %v136, %v148
    %v150 = vlaneseq
    %v151 = vshrl.u32 %v150, 7
    %v152 = vsub.s32 3, %v151
    %v153 = vrot.slane %v136, %v152
    %v160 = vunpack.c.l.b16 %v102
    %v161 = vunpack.c.l.b16 %v103
    %v162 = vpack.c.b16 %v161, %v160
    %v196 = vunpack.c.l.b16 %v104
    %v197 = vunpack.c.h.b16 %v104
    %v198 = vunpack.c.l.b16 %v105
    %v199 = vunpack.c.h.b16 %v105
    %v200 = vunpack.c.l.b16 %v106
    %v201 = vunpack.c.h.b16 %v106
    %v202 = vunpack.c.l.b16 %v107
    %v203 = vunpack.c.h.b16 %v107
    %v204 = vunpack.c.l.b16 %v108
    %v205 = vunpack.c.h.b16 %v108
    %v206 = vunpack.c.l.b16 %v109
    %v207 = vunpack.c.h.b16 %v109
    %v208 = vunpack.c.l.b16 %v110
    %v209 = vunpack.c.h.b16 %v110
    %v210 = vunpack.c.l.b16 %v111
    %v211 = vunpack.c.h.b16 %v111
    %v212 = vunpack.c.l.b16 %v112
    %v213 = vunpack.c.h.b16 %v112
    %v214 = vunpack.c.l.b16 %v113
    %v215 = vunpack.c.h.b16 %v113
    %v216 = vunpack.c.l.b16 %v114
    %v217 = vunpack.c.h.b16 %v114
    %v218 = vunpack.c.l.b16 %v115
    %v219 = vunpack.c.h.b16 %v115
    %v220 = vunpack.c.l.b16 %v116
    %v221 = vunpack.c.h.b16 %v116
    %v222 = vunpack.c.l.b16 %v117
    %v223 = vunpack.c.h.b16 %v117
    %v224 = vunpack.c.l.b16 %v118
    %v225 = vunpack.c.h.b16 %v118
    %v226 = vunpack.c.l.b16 %v119
    %v227 = vunpack.c.h.b16 %v119
    %v228 = vunpack.c.l.b16 %v120
    %v229 = vunpack.c.h.b16 %v120
    %v230 = vunpack.c.l.b16 %v121
    %v231 = vunpack.c.h.b16 %v121
    %v232 = vunpack.c.l.b16 %v122
    %v233 = vunpack.c.h.b16 %v122
    %v234 = vunpack.c.l.b16 %v123
    %v235 = vunpack.c.h.b16 %v123
    %v236 = vunpack.c.l.b16 %v124
    %v237 = vunpack.c.h.b16 %v124
    %v238 = vunpack.c.l.b16 %v125
    %v239 = vunpack.c.h.b16 %v125
    %v240 = vunpack.c.l.b16 %v126
    %v241 = vunpack.c.h.b16 %v126
    %v242 = vunpack.c.l.b16 %v127
    %v243 = vunpack.c.h.b16 %v127
    %v244 = vunpack.c.l.b16 %v128
    %v245 = vunpack.c.h.b16 %v128
    %v246 = vunpack.c.l.b16 %v129
    %v247 = vunpack.c.h.b16 %v129
    %v248 = vunpack.c.l.b16 %v130
    %v249 = vunpack.c.h.b16 %v130
    %v250 = vunpack.c.l.b16 %v131
    %v251 = vunpack.c.h.b16 %v131
    %v252 = vunpack.c.l.b16 %v132
    %v253 = vunpack.c.h.b16 %v132
    %v254 = vunpack.c.l.b16 %v133
    %v255 = vunpack.c.h.b16 %v133
    %v256 = vunpack.c.l.b16 %v134
    %v257 = vunpack.c.h.b16 %v134
    %v258 = vunpack.c.l.b16 %v135
    %v259 = vunpack.c.h.b16 %v135
    %v260 = vpack.c.b16 %v200, %v196
    %v261 = vpack.c.b16 %v201, %v197
    %v262 = vpack.c.b16 %v202, %v198
    %v263 = vpack.c.b16 %v203, %v199
    %v264 = vpack.c.b16 %v208, %v204
    %v265 = vpack.c.b16 %v209, %v205
    %v266 = vpack.c.b16 %v210, %v206
    %v267 = vpack.c.b16 %v211, %v207
    %v268 = vpack.c.b16 %v216, %v212
    %v269 = vpack.c.b16 %v217, %v213
    %v270 = vpack.c.b16 %v218, %v214
    %v271 = vpack.c.b16 %v219, %v215
    %v272 = vpack.c.b16 %v224, %v220
    %v273 = vpack.c.b16 %v225, %v221
    %v274 = vpack.c.b16 %v226, %v222
    %v275 = vpack.c.b16 %v227, %v223
    %v276 = vpack.c.b16 %v232, %v228
    %v277 = vpack.c.b16 %v233, %v229
    %v278 = vpack.c.b16 %v234, %v230
    %v279 = vpack.c.b16 %v235, %v231
    %v280 = vpack.c.b16 %v240, %v236
    %v281 = vpack.c.b16 %v241, %v237
    %v282 = vpack.c.b16 %v242, %v238
    %v283 = vpack.c.b16 %v243, %v239
    %v284 = vpack.c.b16 %v248, %v244
    %v285 = vpack.c.b16 %v249, %v245
    %v286 = vpack.c.b16 %v250, %v246
    %v287 = vpack.c.b16 %v251, %v247
    %v288 = vpack.c.b16 %v256, %v252
    %v289 = vpack.c.b16 %v257, %v253
    %v290 = vpack.c.b16 %v258, %v254
    %v291 = vpack.c.b16 %v259, %v255
    %324 = vmatprep.subr.bf16.mxu0 %v261
    %325 = vmatpush1.bf16.msra.mxu0 %v260
    %326 = vmatprep.subr.bf16.mxu0 %v265
    %327 = vmatpush1.bf16.msra.mxu0 %v264
    %328 = vmatprep.subr.bf16.mxu0 %v269
    %329 = vmatpush1.bf16.msra.mxu0 %v268
    %330 = vmatprep.subr.bf16.mxu0 %v273
    %331 = vmatpush1.bf16.msra.mxu0 %v272
    %332 = vmatprep.subr.bf16.mxu0 %v277
    %333 = vmatpush1.bf16.msra.mxu0 %v276
    %334 = vmatprep.subr.bf16.mxu0 %v281
    %335 = vmatpush1.bf16.msra.mxu0 %v280
    %336 = vmatprep.subr.bf16.mxu0 %v285
    %337 = vmatpush1.bf16.msra.mxu0 %v284
    %338 = vmatprep.subr.bf16.mxu0 %v289
    %339 = vmatpush1.bf16.msra.mxu0 %v288
    %340 = vmatprep.subr.bf16.mxu0 0
    %341 = vmatpush1.bf16.msra.mxu0 0
    %342 = vmatprep.subr.bf16.mxu0 0
    %343 = vmatpush1.bf16.msra.mxu0 0
    %344 = vmatprep.subr.bf16.mxu0 0
    %345 = vmatpush1.bf16.msra.mxu0 0
    %346 = vmatprep.subr.bf16.mxu0 0
    %347 = vmatpush1.bf16.msra.mxu0 0
    %348 = vmatprep.subr.bf16.mxu0 0
    %349 = vmatpush1.bf16.msra.mxu0 0
    %350 = vmatprep.subr.bf16.mxu0 0
    %351 = vmatpush1.bf16.msra.mxu0 0
    %352 = vmatprep.subr.bf16.mxu0 0
    %353 = vmatpush1.bf16.msra.mxu0 0
    %354 = vmatprep.subr.bf16.mxu0 0
    %355 = vmatpush1.bf16.msra.mxu0 0
    %356 = vmatprep.mubr.bf16.mxu0 0
    %357 = vmatmul.mubr.bf16.gmra.mrb[0].mxu0 %v162
    %v358 = vpop.f32.mrb[0].mxu0
    %v359 = vadd.f32 %v141, %v358
    %v360 = vpop.f32.mrb[0].mxu0
    %v361 = vadd.f32 %v145, %v360
    %v362 = vpop.f32.mrb[0].mxu0
    %v363 = vadd.f32 %v141, %v362
    %v364 = vpop.f32.mrb[0].mxu0
    %v365 = vadd.f32 %v145, %v364
    %366 = vdwg.mxu0
    %367 = vmatprep.subr.bf16.mxu0 %v263
    %368 = vmatpush1.bf16.msra.mxu0 %v262
    %369 = vmatprep.subr.bf16.mxu0 %v267
    %370 = vmatpush1.bf16.msra.mxu0 %v266
    %371 = vmatprep.subr.bf16.mxu0 %v271
    %372 = vmatpush1.bf16.msra.mxu0 %v270
    %373 = vmatprep.subr.bf16.mxu0 %v275
    %374 = vmatpush1.bf16.msra.mxu0 %v274
    %375 = vmatprep.subr.bf16.mxu0 %v279
    %376 = vmatpush1.bf16.msra.mxu0 %v278
    %377 = vmatprep.subr.bf16.mxu0 %v283
    %378 = vmatpush1.bf16.msra.mxu0 %v282
    %379 = vmatprep.subr.bf16.mxu0 %v287
    %380 = vmatpush1.bf16.msra.mxu0 %v286
    %381 = vmatprep.subr.bf16.mxu0 %v291
    %382 = vmatpush1.bf16.msra.mxu0 %v290
    %383 = vmatprep.subr.bf16.mxu0 0
    %384 = vmatpush1.bf16.msra.mxu0 0
    %385 = vmatprep.subr.bf16.mxu0 0
    %386 = vmatpush1.bf16.msra.mxu0 0
    %387 = vmatprep.subr.bf16.mxu0 0
    %388 = vmatpush1.bf16.msra.mxu0 0
    %389 = vmatprep.subr.bf16.mxu0 0
    %390 = vmatpush1.bf16.msra.mxu0 0
    %391 = vmatprep.subr.bf16.mxu0 0
    %392 = vmatpush1.bf16.msra.mxu0 0
    %393 = vmatprep.subr.bf16.mxu0 0
    %394 = vmatpush1.bf16.msra.mxu0 0
    %395 = vmatprep.subr.bf16.mxu0 0
    %396 = vmatpush1.bf16.msra.mxu0 0
    %397 = vmatprep.subr.bf16.mxu0 0
    %398 = vmatpush1.bf16.msra.mxu0 0
    %399 = vmatprep.mubr.bf16.mxu0 0
    %400 = vmatmul.mubr.bf16.gmra.mrb[0].mxu0 %v162
    %v401 = vpop.f32.mrb[0].mxu0
    %v402 = vadd.f32 %v149, %v401
    %v403 = vpop.f32.mrb[0].mxu0
    %v404 = vadd.f32 %v153, %v403
    %v405 = vpop.f32.mrb[0].mxu0
    %v406 = vadd.f32 %v149, %v405
    %v407 = vpop.f32.mrb[0].mxu0
    %v408 = vadd.f32 %v153, %v407
    %409 = vdwg.mxu0
    %v410 = vmax.f32 %v359, 0.0
    %v411 = vmax.f32 %v361, 0.0
    %v412 = vmax.f32 %v402, 0.0
    %v413 = vmax.f32 %v404, 0.0
    %v414 = vmax.f32 %v363, 0.0
    %v415 = vmax.f32 %v365, 0.0
    %v416 = vmax.f32 %v406, 0.0
    %v417 = vmax.f32 %v408, 0.0
    %v418 = vpack.c.bf16 %v414, %v410
    %v419 = vpack.c.bf16 %v415, %v411
    %v420 = vld [vmem:[#allocation7] sm:$0xff]
    %v421 = vld [vmem:[#allocation7 + $0x8] sm:$0xff]
    %v422 = vld [vmem:[#allocation7 + $0x10] sm:$0xff]
    %v423 = vld [vmem:[#allocation7 + $0x18] sm:$0xff]
    %v424 = vld [vmem:[#allocation7 + $0x20] sm:$0xff]
    %v425 = vld [vmem:[#allocation7 + $0x28] sm:$0xff]
    %v426 = vld [vmem:[#allocation7 + $0x30] sm:$0xff]
    %v427 = vld [vmem:[#allocation7 + $0x38] sm:$0xff]
    %v428 = vld [vmem:[#allocation7 + $0x40] sm:$0xff]
    %v429 = vld [vmem:[#allocation7 + $0x48] sm:$0xff]
    %v430 = vld [vmem:[#allocation7 + $0x50] sm:$0xff]
    %v431 = vld [vmem:[#allocation7 + $0x58] sm:$0xff]
    %v432 = vld [vmem:[#allocation7 + $0x60] sm:$0xff]
    %v433 = vld [vmem:[#allocation7 + $0x68] sm:$0xff]
    %v434 = vld [vmem:[#allocation7 + $0x70] sm:$0xff]
    %v435 = vld [vmem:[#allocation7 + $0x78] sm:$0xff]
    %v436 = vld [vmem:[#allocation7 + $0x80] sm:$0xff]
    %v437 = vld [vmem:[#allocation7 + $0x88] sm:$0xff]
    %v438 = vld [vmem:[#allocation7 + $0x90] sm:$0xff]
    %v439 = vld [vmem:[#allocation7 + $0x98] sm:$0xff]
    %v440 = vld [vmem:[#allocation7 + $0xa0] sm:$0xff]
    %v441 = vld [vmem:[#allocation7 + $0xa8] sm:$0xff]
    %v442 = vld [vmem:[#allocation7 + $0xb0] sm:$0xff]
    %v443 = vld [vmem:[#allocation7 + $0xb8] sm:$0xff]
    %v444 = vld [vmem:[#allocation7 + $0xc0] sm:$0xff]
    %v445 = vld [vmem:[#allocation7 + $0xc8] sm:$0xff]
    %v446 = vld [vmem:[#allocation7 + $0xd0] sm:$0xff]
    %v447 = vld [vmem:[#allocation7 + $0xd8] sm:$0xff]
    %v448 = vld [vmem:[#allocation7 + $0xe0] sm:$0xff]
    %v449 = vld [vmem:[#allocation7 + $0xe8] sm:$0xff]
    %v450 = vld [vmem:[#allocation7 + $0xf0] sm:$0xff]
    %v451 = vld [vmem:[#allocation7 + $0xf8] sm:$0xff]
    %v452 = vld [vmem:[%s4] sm:$0x3]
    %v454 = vlaneseq
    %v455 = vshrl.u32 %v454, 7
    %v456 = vsub.s32 0, %v455
    %v457 = vrot.slane %v452, %v456
    %v458 = vlaneseq
    %v459 = vshrl.u32 %v458, 7
    %v460 = vsub.s32 1, %v459
    %v461 = vrot.slane %v452, %v460
    %v496 = vunpack.c.l.b16 %v420
    %v497 = vunpack.c.h.b16 %v420
    %v498 = vunpack.c.l.b16 %v421
    %v499 = vunpack.c.h.b16 %v421
    %v500 = vunpack.c.l.b16 %v422
    %v501 = vunpack.c.h.b16 %v422
    %v502 = vunpack.c.l.b16 %v423
    %v503 = vunpack.c.h.b16 %v423
    %v504 = vunpack.c.l.b16 %v424
    %v505 = vunpack.c.h.b16 %v424
    %v506 = vunpack.c.l.b16 %v425
    %v507 = vunpack.c.h.b16 %v425
    %v508 = vunpack.c.l.b16 %v426
    %v509 = vunpack.c.h.b16 %v426
    %v510 = vunpack.c.l.b16 %v427
    %v511 = vunpack.c.h.b16 %v427
    %v512 = vunpack.c.l.b16 %v428
    %v513 = vunpack.c.h.b16 %v428
    %v514 = vunpack.c.l.b16 %v429
    %v515 = vunpack.c.h.b16 %v429
    %v516 = vunpack.c.l.b16 %v430
    %v517 = vunpack.c.h.b16 %v430
    %v518 = vunpack.c.l.b16 %v431
    %v519 = vunpack.c.h.b16 %v431
    %v520 = vunpack.c.l.b16 %v432
    %v521 = vunpack.c.h.b16 %v432
    %v522 = vunpack.c.l.b16 %v433
    %v523 = vunpack.c.h.b16 %v433
    %v524 = vunpack.c.l.b16 %v434
    %v525 = vunpack.c.h.b16 %v434
    %v526 = vunpack.c.l.b16 %v435
    %v527 = vunpack.c.h.b16 %v435
    %v528 = vunpack.c.l.b16 %v436
    %v529 = vunpack.c.h.b16 %v436
    %v530 = vunpack.c.l.b16 %v437
    %v531 = vunpack.c.h.b16 %v437
    %v532 = vunpack.c.l.b16 %v438
    %v533 = vunpack.c.h.b16 %v438
    %v534 = vunpack.c.l.b16 %v439
    %v535 = vunpack.c.h.b16 %v439
    %v536 = vunpack.c.l.b16 %v440
    %v537 = vunpack.c.h.b16 %v440
    %v538 = vunpack.c.l.b16 %v441
    %v539 = vunpack.c.h.b16 %v441
    %v540 = vunpack.c.l.b16 %v442
    %v541 = vunpack.c.h.b16 %v442
    %v542 = vunpack.c.l.b16 %v443
    %v543 = vunpack.c.h.b16 %v443
    %v544 = vunpack.c.l.b16 %v444
    %v545 = vunpack.c.h.b16 %v444
    %v546 = vunpack.c.l.b16 %v445
    %v547 = vunpack.c.h.b16 %v445
    %v548 = vunpack.c.l.b16 %v446
    %v549 = vunpack.c.h.b16 %v446
    %v550 = vunpack.c.l.b16 %v447
    %v551 = vunpack.c.h.b16 %v447
    %v552 = vunpack.c.l.b16 %v448
    %v553 = vunpack.c.h.b16 %v448
    %v554 = vunpack.c.l.b16 %v449
    %v555 = vunpack.c.h.b16 %v449
    %v556 = vunpack.c.l.b16 %v450
    %v557 = vunpack.c.h.b16 %v450
    %v558 = vunpack.c.l.b16 %v451
    %v559 = vunpack.c.h.b16 %v451
    %v560 = vpack.c.b16 %v498, %v496
    %v561 = vpack.c.b16 %v499, %v497
    %v562 = vpack.c.b16 %v502, %v500
    %v563 = vpack.c.b16 %v503, %v501
    %v564 = vpack.c.b16 %v506, %v504
    %v565 = vpack.c.b16 %v507, %v505
    %v566 = vpack.c.b16 %v510, %v508
    %v567 = vpack.c.b16 %v511, %v509
    %v568 = vpack.c.b16 %v514, %v512
    %v569 = vpack.c.b16 %v515, %v513
    %v570 = vpack.c.b16 %v518, %v516
    %v571 = vpack.c.b16 %v519, %v517
    %v572 = vpack.c.b16 %v522, %v520
    %v573 = vpack.c.b16 %v523, %v521
    %v574 = vpack.c.b16 %v526, %v524
    %v575 = vpack.c.b16 %v527, %v525
    %v576 = vpack.c.b16 %v530, %v528
    %v577 = vpack.c.b16 %v531, %v529
    %v578 = vpack.c.b16 %v534, %v532
    %v579 = vpack.c.b16 %v535, %v533
    %v580 = vpack.c.b16 %v538, %v536
    %v581 = vpack.c.b16 %v539, %v537
    %v582 = vpack.c.b16 %v542, %v540
    %v583 = vpack.c.b16 %v543, %v541
    %v584 = vpack.c.b16 %v546, %v544
    %v585 = vpack.c.b16 %v547, %v545
    %v586 = vpack.c.b16 %v550, %v548
    %v587 = vpack.c.b16 %v551, %v549
    %v588 = vpack.c.b16 %v554, %v552
    %v589 = vpack.c.b16 %v555, %v553
    %v590 = vpack.c.b16 %v558, %v556
    %v591 = vpack.c.b16 %v559, %v557
    %624 = vmatprep.subr.bf16.mxu0 %v561
    %625 = vmatpush1.bf16.msra.mxu0 %v560
    %626 = vmatprep.subr.bf16.mxu0 %v563
    %627 = vmatpush1.bf16.msra.mxu0 %v562
    %628 = vmatprep.subr.bf16.mxu0 %v565
    %629 = vmatpush1.bf16.msra.mxu0 %v564
    %630 = vmatprep.subr.bf16.mxu0 %v567
    %631 = vmatpush1.bf16.msra.mxu0 %v566
    %632 = vmatprep.subr.bf16.mxu0 %v569
    %633 = vmatpush1.bf16.msra.mxu0 %v568
    %634 = vmatprep.subr.bf16.mxu0 %v571
    %635 = vmatpush1.bf16.msra.mxu0 %v570
    %636 = vmatprep.subr.bf16.mxu0 %v573
    %637 = vmatpush1.bf16.msra.mxu0 %v572
    %638 = vmatprep.subr.bf16.mxu0 %v575
    %639 = vmatpush1.bf16.msra.mxu0 %v574
    %640 = vmatprep.subr.bf16.mxu0 %v577
    %641 = vmatpush1.bf16.msra.mxu0 %v576
    %642 = vmatprep.subr.bf16.mxu0 %v579
    %643 = vmatpush1.bf16.msra.mxu0 %v578
    %644 = vmatprep.subr.bf16.mxu0 %v581
    %645 = vmatpush1.bf16.msra.mxu0 %v580
    %646 = vmatprep.subr.bf16.mxu0 %v583
    %647 = vmatpush1.bf16.msra.mxu0 %v582
    %648 = vmatprep.subr.bf16.mxu0 %v585
    %649 = vmatpush1.bf16.msra.mxu0 %v584
    %650 = vmatprep.subr.bf16.mxu0 %v587
    %651 = vmatpush1.bf16.msra.mxu0 %v586
    %652 = vmatprep.subr.bf16.mxu0 %v589
    %653 = vmatpush1.bf16.msra.mxu0 %v588
    %654 = vmatprep.subr.bf16.mxu0 %v591
    %655 = vmatpush1.bf16.msra.mxu0 %v590
    %656 = vmatprep.mubr.bf16.mxu0 %v419
    %657 = vmatmul.mubr.bf16.gmra.mrb[0].mxu0 %v418
    %v658 = vpop.f32.mrb[0].mxu0
    %v659 = vadd.f32 %v457, %v658
    %v660 = vpop.f32.mrb[0].mxu0
    %v661 = vadd.f32 %v461, %v660
    %v662 = vpop.f32.mrb[0].mxu0
    %v663 = vadd.f32 %v457, %v662
    %v664 = vpop.f32.mrb[0].mxu0
    %v665 = vadd.f32 %v461, %v664
    %666 = vdwg.mxu0
    %v667 = vmax.f32 %v659, 0.0
    %v668 = vmax.f32 %v661, 0.0
    %v669 = vmax.f32 %v663, 0.0
    %v670 = vmax.f32 %v665, 0.0
    %v671 = vpack.c.bf16 %v416, %v412
    %v672 = vpack.c.bf16 %v417, %v413
    %v673 = vld [vmem:[#allocation8] sm:$0xff]
    %v674 = vld [vmem:[#allocation8 + $0x8] sm:$0xff]
    %v675 = vld [vmem:[#allocation8 + $0x10] sm:$0xff]
    %v676 = vld [vmem:[#allocation8 + $0x18] sm:$0xff]
    %v677 = vld [vmem:[#allocation8 + $0x20] sm:$0xff]
    %v678 = vld [vmem:[#allocation8 + $0x28] sm:$0xff]
    %v679 = vld [vmem:[#allocation8 + $0x30] sm:$0xff]
    %v680 = vld [vmem:[#allocation8 + $0x38] sm:$0xff]
    %v681 = vld [vmem:[#allocation8 + $0x40] sm:$0xff]
    %v682 = vld [vmem:[#allocation8 + $0x48] sm:$0xff]
    %v683 = vld [vmem:[#allocation8 + $0x50] sm:$0xff]
    %v684 = vld [vmem:[#allocation8 + $0x58] sm:$0xff]
    %v685 = vld [vmem:[#allocation8 + $0x60] sm:$0xff]
    %v686 = vld [vmem:[#allocation8 + $0x68] sm:$0xff]
    %v687 = vld [vmem:[#allocation8 + $0x70] sm:$0xff]
    %v688 = vld [vmem:[#allocation8 + $0x78] sm:$0xff]
    %v689 = vld [vmem:[#allocation8 + $0x80] sm:$0xff]
    %v690 = vld [vmem:[#allocation8 + $0x88] sm:$0xff]
    %v691 = vld [vmem:[#allocation8 + $0x90] sm:$0xff]
    %v692 = vld [vmem:[#allocation8 + $0x98] sm:$0xff]
    %v693 = vld [vmem:[#allocation8 + $0xa0] sm:$0xff]
    %v694 = vld [vmem:[#allocation8 + $0xa8] sm:$0xff]
    %v695 = vld [vmem:[#allocation8 + $0xb0] sm:$0xff]
    %v696 = vld [vmem:[#allocation8 + $0xb8] sm:$0xff]
    %v697 = vld [vmem:[#allocation8 + $0xc0] sm:$0xff]
    %v698 = vld [vmem:[#allocation8 + $0xc8] sm:$0xff]
    %v699 = vld [vmem:[#allocation8 + $0xd0] sm:$0xff]
    %v700 = vld [vmem:[#allocation8 + $0xd8] sm:$0xff]
    %v701 = vld [vmem:[#allocation8 + $0xe0] sm:$0xff]
    %v702 = vld [vmem:[#allocation8 + $0xe8] sm:$0xff]
    %v703 = vld [vmem:[#allocation8 + $0xf0] sm:$0xff]
    %v704 = vld [vmem:[#allocation8 + $0xf8] sm:$0xff]
    %v705 = vld [vmem:[%s6] sm:$0x3]
    %v707 = vlaneseq
    %v708 = vshrl.u32 %v707, 7
    %v709 = vsub.s32 0, %v708
    %v710 = vrot.slane %v705, %v709
    %v711 = vlaneseq
    %v712 = vshrl.u32 %v711, 7
    %v713 = vsub.s32 1, %v712
    %v714 = vrot.slane %v705, %v713
    %v749 = vunpack.c.l.b16 %v673
    %v750 = vunpack.c.h.b16 %v673
    %v751 = vunpack.c.l.b16 %v674
    %v752 = vunpack.c.h.b16 %v674
    %v753 = vunpack.c.l.b16 %v675
    %v754 = vunpack.c.h.b16 %v675
    %v755 = vunpack.c.l.b16 %v676
    %v756 = vunpack.c.h.b16 %v676
    %v757 = vunpack.c.l.b16 %v677
    %v758 = vunpack.c.h.b16 %v677
    %v759 = vunpack.c.l.b16 %v678
    %v760 = vunpack.c.h.b16 %v678
    %v761 = vunpack.c.l.b16 %v679
    %v762 = vunpack.c.h.b16 %v679
    %v763 = vunpack.c.l.b16 %v680
    %v764 = vunpack.c.h.b16 %v680
    %v765 = vunpack.c.l.b16 %v681
    %v766 = vunpack.c.h.b16 %v681
    %v767 = vunpack.c.l.b16 %v682
    %v768 = vunpack.c.h.b16 %v682
    %v769 = vunpack.c.l.b16 %v683
    %v770 = vunpack.c.h.b16 %v683
    %v771 = vunpack.c.l.b16 %v684
    %v772 = vunpack.c.h.b16 %v684
    %v773 = vunpack.c.l.b16 %v685
    %v774 = vunpack.c.h.b16 %v685
    %v775 = vunpack.c.l.b16 %v686
    %v776 = vunpack.c.h.b16 %v686
    %v777 = vunpack.c.l.b16 %v687
    %v778 = vunpack.c.h.b16 %v687
    %v779 = vunpack.c.l.b16 %v688
    %v780 = vunpack.c.h.b16 %v688
    %v781 = vunpack.c.l.b16 %v689
    %v782 = vunpack.c.h.b16 %v689
    %v783 = vunpack.c.l.b16 %v690
    %v784 = vunpack.c.h.b16 %v690
    %v785 = vunpack.c.l.b16 %v691
    %v786 = vunpack.c.h.b16 %v691
    %v787 = vunpack.c.l.b16 %v692
    %v788 = vunpack.c.h.b16 %v692
    %v789 = vunpack.c.l.b16 %v693
    %v790 = vunpack.c.h.b16 %v693
    %v791 = vunpack.c.l.b16 %v694
    %v792 = vunpack.c.h.b16 %v694
    %v793 = vunpack.c.l.b16 %v695
    %v794 = vunpack.c.h.b16 %v695
    %v795 = vunpack.c.l.b16 %v696
    %v796 = vunpack.c.h.b16 %v696
    %v797 = vunpack.c.l.b16 %v697
    %v798 = vunpack.c.h.b16 %v697
    %v799 = vunpack.c.l.b16 %v698
    %v800 = vunpack.c.h.b16 %v698
    %v801 = vunpack.c.l.b16 %v699
    %v802 = vunpack.c.h.b16 %v699
    %v803 = vunpack.c.l.b16 %v700
    %v804 = vunpack.c.h.b16 %v700
    %v805 = vunpack.c.l.b16 %v701
    %v806 = vunpack.c.h.b16 %v701
    %v807 = vunpack.c.l.b16 %v702
    %v808 = vunpack.c.h.b16 %v702
    %v809 = vunpack.c.l.b16 %v703
    %v810 = vunpack.c.h.b16 %v703
    %v811 = vunpack.c.l.b16 %v704
    %v812 = vunpack.c.h.b16 %v704
    %v813 = vpack.c.b16 %v751, %v749
    %v814 = vpack.c.b16 %v752, %v750
    %v815 = vpack.c.b16 %v755, %v753
    %v816 = vpack.c.b16 %v756, %v754
    %v817 = vpack.c.b16 %v759, %v757
    %v818 = vpack.c.b16 %v760, %v758
    %v819 = vpack.c.b16 %v763, %v761
    %v820 = vpack.c.b16 %v764, %v762
    %v821 = vpack.c.b16 %v767, %v765
    %v822 = vpack.c.b16 %v768, %v766
    %v823 = vpack.c.b16 %v771, %v769
    %v824 = vpack.c.b16 %v772, %v770
    %v825 = vpack.c.b16 %v775, %v773
    %v826 = vpack.c.b16 %v776, %v774
    %v827 = vpack.c.b16 %v779, %v777
    %v828 = vpack.c.b16 %v780, %v778
    %v829 = vpack.c.b16 %v783, %v781
    %v830 = vpack.c.b16 %v784, %v782
    %v831 = vpack.c.b16 %v787, %v785
    %v832 = vpack.c.b16 %v788, %v786
    %v833 = vpack.c.b16 %v791, %v789
    %v834 = vpack.c.b16 %v792, %v790
    %v835 = vpack.c.b16 %v795, %v793
    %v836 = vpack.c.b16 %v796, %v794
    %v837 = vpack.c.b16 %v799, %v797
    %v838 = vpack.c.b16 %v800, %v798
    %v839 = vpack.c.b16 %v803, %v801
    %v840 = vpack.c.b16 %v804, %v802
    %v841 = vpack.c.b16 %v807, %v805
    %v842 = vpack.c.b16 %v808, %v806
    %v843 = vpack.c.b16 %v811, %v809
    %v844 = vpack.c.b16 %v812, %v810
    %877 = vmatprep.subr.bf16.mxu0 %v814
    %878 = vmatpush1.bf16.msra.mxu0 %v813
    %879 = vmatprep.subr.bf16.mxu0 %v816
    %880 = vmatpush1.bf16.msra.mxu0 %v815
    %881 = vmatprep.subr.bf16.mxu0 %v818
    %882 = vmatpush1.bf16.msra.mxu0 %v817
    %883 = vmatprep.subr.bf16.mxu0 %v820
    %884 = vmatpush1.bf16.msra.mxu0 %v819
    %885 = vmatprep.subr.bf16.mxu0 %v822
    %886 = vmatpush1.bf16.msra.mxu0 %v821
    %887 = vmatprep.subr.bf16.mxu0 %v824
    %888 = vmatpush1.bf16.msra.mxu0 %v823
    %889 = vmatprep.subr.bf16.mxu0 %v826
    %890 = vmatpush1.bf16.msra.mxu0 %v825
    %891 = vmatprep.subr.bf16.mxu0 %v828
    %892 = vmatpush1.bf16.msra.mxu0 %v827
    %893 = vmatprep.subr.bf16.mxu0 %v830
    %894 = vmatpush1.bf16.msra.mxu0 %v829
    %895 = vmatprep.subr.bf16.mxu0 %v832
    %896 = vmatpush1.bf16.msra.mxu0 %v831
    %897 = vmatprep.subr.bf16.mxu0 %v834
    %898 = vmatpush1.bf16.msra.mxu0 %v833
    %899 = vmatprep.subr.bf16.mxu0 %v836
    %900 = vmatpush1.bf16.msra.mxu0 %v835
    %901 = vmatprep.subr.bf16.mxu0 %v838
    %902 = vmatpush1.bf16.msra.mxu0 %v837
    %903 = vmatprep.subr.bf16.mxu0 %v840
    %904 = vmatpush1.bf16.msra.mxu0 %v839
    %905 = vmatprep.subr.bf16.mxu0 %v842
    %906 = vmatpush1.bf16.msra.mxu0 %v841
    %907 = vmatprep.subr.bf16.mxu0 %v844
    %908 = vmatpush1.bf16.msra.mxu0 %v843
    %909 = vmatprep.mubr.bf16.mxu0 %v672
    %910 = vmatmul.mubr.bf16.gmra.mrb[0].mxu0 %v671
    %v911 = vpop.f32.mrb[0].mxu0
    %v912 = vadd.f32 %v710, %v911
    %v913 = vpop.f32.mrb[0].mxu0
    %v914 = vadd.f32 %v714, %v913
    %v915 = vpop.f32.mrb[0].mxu0
    %v916 = vadd.f32 %v710, %v915
    %v917 = vpop.f32.mrb[0].mxu0
    %v918 = vadd.f32 %v714, %v917
    %919 = vdwg.mxu0
    %v920 = vmax.f32 %v912, 0.0
    %v921 = vmax.f32 %v914, 0.0
    %v922 = vmax.f32 %v916, 0.0
    %v923 = vmax.f32 %v918, 0.0
    %v924 = vpack.c.bf16 %v669, %v667
    %v925 = vpack.c.bf16 %v670, %v668
    %v926 = vpack.c.bf16 %v922, %v920
    %v927 = vpack.c.bf16 %v923, %v921
    %v928 = vld [vmem:[#allocation10] sm:$0xf]
    %v929 = vld [vmem:[#allocation10 + $0x4] sm:$0xf]
    %v930 = vld [vmem:[#allocation10 + $0x8] sm:$0xf]
    %v931 = vld [vmem:[#allocation10 + $0xc] sm:$0xf]
    %v932 = vld [vmem:[#allocation10 + $0x10] sm:$0xf]
    %v933 = vld [vmem:[#allocation10 + $0x14] sm:$0xf]
    %v934 = vld [vmem:[#allocation10 + $0x18] sm:$0xf]
    %v935 = vld [vmem:[#allocation10 + $0x1c] sm:$0xf]
    %v936 = vld [vmem:[#allocation10 + $0x20] sm:$0xf]
    %v937 = vld [vmem:[#allocation10 + $0x24] sm:$0xf]
    %v938 = vld [vmem:[#allocation10 + $0x28] sm:$0xf]
    %v939 = vld [vmem:[#allocation10 + $0x2c] sm:$0xf]
    %v940 = vld [vmem:[#allocation10 + $0x30] sm:$0xf]
    %v941 = vld [vmem:[#allocation10 + $0x34] sm:$0xf]
    %v942 = vld [vmem:[#allocation10 + $0x38] sm:$0xf]
    %v943 = vld [vmem:[#allocation10 + $0x3c] sm:$0xf]
    %v944 = vld [vmem:[#allocation10 + $0x40] sm:$0xf]
    %v945 = vld [vmem:[#allocation10 + $0x44] sm:$0xf]
    %v946 = vld [vmem:[#allocation10 + $0x48] sm:$0xf]
    %v947 = vld [vmem:[#allocation10 + $0x4c] sm:$0xf]
    %v948 = vld [vmem:[#allocation10 + $0x50] sm:$0xf]
    %v949 = vld [vmem:[#allocation10 + $0x54] sm:$0xf]
    %v950 = vld [vmem:[#allocation10 + $0x58] sm:$0xf]
    %v951 = vld [vmem:[#allocation10 + $0x5c] sm:$0xf]
    %v952 = vld [vmem:[#allocation10 + $0x60] sm:$0xf]
    %v953 = vld [vmem:[#allocation10 + $0x64] sm:$0xf]
    %v954 = vld [vmem:[#allocation10 + $0x68] sm:$0xf]
    %v955 = vld [vmem:[#allocation10 + $0x6c] sm:$0xf]
    %v956 = vld [vmem:[#allocation10 + $0x70] sm:$0xf]
    %v957 = vld [vmem:[#allocation10 + $0x74] sm:$0xf]
    %v958 = vld [vmem:[#allocation10 + $0x78] sm:$0xf]
    %v959 = vld [vmem:[#allocation10 + $0x7c] sm:$0xf]
    %v960 = vld [vmem:[#allocation10 + $0x80] sm:$0xf]
    %v961 = vld [vmem:[#allocation10 + $0x84] sm:$0xf]
    %v962 = vld [vmem:[#allocation10 + $0x88] sm:$0xf]
    %v963 = vld [vmem:[#allocation10 + $0x8c] sm:$0xf]
    %v964 = vld [vmem:[#allocation10 + $0x90] sm:$0xf]
    %v965 = vld [vmem:[#allocation10 + $0x94] sm:$0xf]
    %v966 = vld [vmem:[#allocation10 + $0x98] sm:$0xf]
    %v967 = vld [vmem:[#allocation10 + $0x9c] sm:$0xf]
    %v968 = vld [vmem:[#allocation10 + $0xa0] sm:$0xf]
    %v969 = vld [vmem:[#allocation10 + $0xa4] sm:$0xf]
    %v970 = vld [vmem:[#allocation10 + $0xa8] sm:$0xf]
    %v971 = vld [vmem:[#allocation10 + $0xac] sm:$0xf]
    %v972 = vld [vmem:[#allocation10 + $0xb0] sm:$0xf]
    %v973 = vld [vmem:[#allocation10 + $0xb4] sm:$0xf]
    %v974 = vld [vmem:[#allocation10 + $0xb8] sm:$0xf]
    %v975 = vld [vmem:[#allocation10 + $0xbc] sm:$0xf]
    %v976 = vld [vmem:[#allocation10 + $0xc0] sm:$0xf]
    %v977 = vld [vmem:[#allocation10 + $0xc4] sm:$0xf]
    %v978 = vld [vmem:[#allocation10 + $0xc8] sm:$0xf]
    %v979 = vld [vmem:[#allocation10 + $0xcc] sm:$0xf]
    %v980 = vld [vmem:[#allocation10 + $0xd0] sm:$0xf]
    %v981 = vld [vmem:[#allocation10 + $0xd4] sm:$0xf]
    %v982 = vld [vmem:[#allocation10 + $0xd8] sm:$0xf]
    %v983 = vld [vmem:[#allocation10 + $0xdc] sm:$0xf]
    %v984 = vld [vmem:[#allocation10 + $0xe0] sm:$0xf]
    %v985 = vld [vmem:[#allocation10 + $0xe4] sm:$0xf]
    %v986 = vld [vmem:[#allocation10 + $0xe8] sm:$0xf]
    %v987 = vld [vmem:[#allocation10 + $0xec] sm:$0xf]
    %v988 = vld [vmem:[#allocation10 + $0xf0] sm:$0xf]
    %v989 = vld [vmem:[#allocation10 + $0xf4] sm:$0xf]
    %v990 = vld [vmem:[#allocation10 + $0xf8] sm:$0xf]
    %v991 = vld [vmem:[#allocation10 + $0xfc] sm:$0xf]
    %v992 = vld [vmem:[%s8] sm:$0x1]
    %v994 = vlaneseq
    %v995 = vshrl.u32 %v994, 7
    %v996 = vsub.s32 0, %v995
    %v997 = vrot.slane %v992, %v996
    %v1063 = vunpack.c.l.b16 %v928
    %v1064 = vunpack.c.l.b16 %v929
    %v1065 = vunpack.c.l.b16 %v930
    %v1066 = vunpack.c.l.b16 %v931
    %v1067 = vunpack.c.l.b16 %v932
    %v1068 = vunpack.c.l.b16 %v933
    %v1069 = vunpack.c.l.b16 %v934
    %v1070 = vunpack.c.l.b16 %v935
    %v1071 = vunpack.c.l.b16 %v936
    %v1072 = vunpack.c.l.b16 %v937
    %v1073 = vunpack.c.l.b16 %v938
    %v1074 = vunpack.c.l.b16 %v939
    %v1075 = vunpack.c.l.b16 %v940
    %v1076 = vunpack.c.l.b16 %v941
    %v1077 = vunpack.c.l.b16 %v942
    %v1078 = vunpack.c.l.b16 %v943
    %v1079 = vunpack.c.l.b16 %v944
    %v1080 = vunpack.c.l.b16 %v945
    %v1081 = vunpack.c.l.b16 %v946
    %v1082 = vunpack.c.l.b16 %v947
    %v1083 = vunpack.c.l.b16 %v948
    %v1084 = vunpack.c.l.b16 %v949
    %v1085 = vunpack.c.l.b16 %v950
    %v1086 = vunpack.c.l.b16 %v951
    %v1087 = vunpack.c.l.b16 %v952
    %v1088 = vunpack.c.l.b16 %v953
    %v1089 = vunpack.c.l.b16 %v954
    %v1090 = vunpack.c.l.b16 %v955
    %v1091 = vunpack.c.l.b16 %v956
    %v1092 = vunpack.c.l.b16 %v957
    %v1093 = vunpack.c.l.b16 %v958
    %v1094 = vunpack.c.l.b16 %v959
    %v1095 = vunpack.c.l.b16 %v960
    %v1096 = vunpack.c.l.b16 %v961
    %v1097 = vunpack.c.l.b16 %v962
    %v1098 = vunpack.c.l.b16 %v963
    %v1099 = vunpack.c.l.b16 %v964
    %v1100 = vunpack.c.l.b16 %v965
    %v1101 = vunpack.c.l.b16 %v966
    %v1102 = vunpack.c.l.b16 %v967
    %v1103 = vunpack.c.l.b16 %v968
    %v1104 = vunpack.c.l.b16 %v969
    %v1105 = vunpack.c.l.b16 %v970
    %v1106 = vunpack.c.l.b16 %v971
    %v1107 = vunpack.c.l.b16 %v972
    %v1108 = vunpack.c.l.b16 %v973
    %v1109 = vunpack.c.l.b16 %v974
    %v1110 = vunpack.c.l.b16 %v975
    %v1111 = vunpack.c.l.b16 %v976
    %v1112 = vunpack.c.l.b16 %v977
    %v1113 = vunpack.c.l.b16 %v978
    %v1114 = vunpack.c.l.b16 %v979
    %v1115 = vunpack.c.l.b16 %v980
    %v1116 = vunpack.c.l.b16 %v981
    %v1117 = vunpack.c.l.b16 %v982
    %v1118 = vunpack.c.l.b16 %v983
    %v1119 = vunpack.c.l.b16 %v984
    %v1120 = vunpack.c.l.b16 %v985
    %v1121 = vunpack.c.l.b16 %v986
    %v1122 = vunpack.c.l.b16 %v987
    %v1123 = vunpack.c.l.b16 %v988
    %v1124 = vunpack.c.l.b16 %v989
    %v1125 = vunpack.c.l.b16 %v990
    %v1126 = vunpack.c.l.b16 %v991
    %v1127 = vpack.c.b16 %v1064, %v1063
    %v1128 = vpack.c.b16 %v1066, %v1065
    %v1129 = vpack.c.b16 %v1068, %v1067
    %v1130 = vpack.c.b16 %v1070, %v1069
    %v1131 = vpack.c.b16 %v1072, %v1071
    %v1132 = vpack.c.b16 %v1074, %v1073
    %v1133 = vpack.c.b16 %v1076, %v1075
    %v1134 = vpack.c.b16 %v1078, %v1077
    %v1135 = vpack.c.b16 %v1080, %v1079
    %v1136 = vpack.c.b16 %v1082, %v1081
    %v1137 = vpack.c.b16 %v1084, %v1083
    %v1138 = vpack.c.b16 %v1086, %v1085
    %v1139 = vpack.c.b16 %v1088, %v1087
    %v1140 = vpack.c.b16 %v1090, %v1089
    %v1141 = vpack.c.b16 %v1092, %v1091
    %v1142 = vpack.c.b16 %v1094, %v1093
    %v1143 = vpack.c.b16 %v1096, %v1095
    %v1144 = vpack.c.b16 %v1098, %v1097
    %v1145 = vpack.c.b16 %v1100, %v1099
    %v1146 = vpack.c.b16 %v1102, %v1101
    %v1147 = vpack.c.b16 %v1104, %v1103
    %v1148 = vpack.c.b16 %v1106, %v1105
    %v1149 = vpack.c.b16 %v1108, %v1107
    %v1150 = vpack.c.b16 %v1110, %v1109
    %v1151 = vpack.c.b16 %v1112, %v1111
    %v1152 = vpack.c.b16 %v1114, %v1113
    %v1153 = vpack.c.b16 %v1116, %v1115
    %v1154 = vpack.c.b16 %v1118, %v1117
    %v1155 = vpack.c.b16 %v1120, %v1119
    %v1156 = vpack.c.b16 %v1122, %v1121
    %v1157 = vpack.c.b16 %v1124, %v1123
    %v1158 = vpack.c.b16 %v1126, %v1125
    %1191 = vmatprep.subr.bf16.mxu0 0
    %1192 = vmatpush1.bf16.msra.mxu0 %v1127
    %1193 = vmatprep.subr.bf16.mxu0 0
    %1194 = vmatpush1.bf16.msra.mxu0 %v1128
    %1195 = vmatprep.subr.bf16.mxu0 0
    %1196 = vmatpush1.bf16.msra.mxu0 %v1129
    %1197 = vmatprep.subr.bf16.mxu0 0
    %1198 = vmatpush1.bf16.msra.mxu0 %v1130
    %1199 = vmatprep.subr.bf16.mxu0 0
    %1200 = vmatpush1.bf16.msra.mxu0 %v1131
    %1201 = vmatprep.subr.bf16.mxu0 0
    %1202 = vmatpush1.bf16.msra.mxu0 %v1132
    %1203 = vmatprep.subr.bf16.mxu0 0
    %1204 = vmatpush1.bf16.msra.mxu0 %v1133
    %1205 = vmatprep.subr.bf16.mxu0 0
    %1206 = vmatpush1.bf16.msra.mxu0 %v1134
    %1207 = vmatprep.subr.bf16.mxu0 0
    %1208 = vmatpush1.bf16.msra.mxu0 %v1135
    %1209 = vmatprep.subr.bf16.mxu0 0
    %1210 = vmatpush1.bf16.msra.mxu0 %v1136
    %1211 = vmatprep.subr.bf16.mxu0 0
    %1212 = vmatpush1.bf16.msra.mxu0 %v1137
    %1213 = vmatprep.subr.bf16.mxu0 0
    %1214 = vmatpush1.bf16.msra.mxu0 %v1138
    %1215 = vmatprep.subr.bf16.mxu0 0
    %1216 = vmatpush1.bf16.msra.mxu0 %v1139
    %1217 = vmatprep.subr.bf16.mxu0 0
    %1218 = vmatpush1.bf16.msra.mxu0 %v1140
    %1219 = vmatprep.subr.bf16.mxu0 0
    %1220 = vmatpush1.bf16.msra.mxu0 %v1141
    %1221 = vmatprep.subr.bf16.mxu0 0
    %1222 = vmatpush1.bf16.msra.mxu0 %v1142
    %1223 = vmatprep.mubr.bf16.mxu0 %v925
    %1224 = vmatmul.mubr.bf16.gmra.mrb[0].mxu0 %v924
    %v1225 = vpop.f32.mrb[0].mxu0
    %v1226 = vadd.f32 %v997, %v1225
    %v1227 = vpop.f32.mrb[0].mxu0
    %v1228 = vpop.f32.mrb[0].mxu0
    %v1229 = vadd.f32 %v997, %v1228
    %v1230 = vpop.f32.mrb[0].mxu0
    %1231 = vdwg.mxu0
    %1232 = vmatprep.subr.bf16.mxu0 0
    %1233 = vmatpush1.bf16.msra.mxu0 %v1143
    %1234 = vmatprep.subr.bf16.mxu0 0
    %1235 = vmatpush1.bf16.msra.mxu0 %v1144
    %1236 = vmatprep.subr.bf16.mxu0 0
    %1237 = vmatpush1.bf16.msra.mxu0 %v1145
    %1238 = vmatprep.subr.bf16.mxu0 0
    %1239 = vmatpush1.bf16.msra.mxu0 %v1146
    %1240 = vmatprep.subr.bf16.mxu0 0
    %1241 = vmatpush1.bf16.msra.mxu0 %v1147
    %1242 = vmatprep.subr.bf16.mxu0 0
    %1243 = vmatpush1.bf16.msra.mxu0 %v1148
    %1244 = vmatprep.subr.bf16.mxu0 0
    %1245 = vmatpush1.bf16.msra.mxu0 %v1149
    %1246 = vmatprep.subr.bf16.mxu0 0
    %1247 = vmatpush1.bf16.msra.mxu0 %v1150
    %1248 = vmatprep.subr.bf16.mxu0 0
    %1249 = vmatpush1.bf16.msra.mxu0 %v1151
    %1250 = vmatprep.subr.bf16.mxu0 0
    %1251 = vmatpush1.bf16.msra.mxu0 %v1152
    %1252 = vmatprep.subr.bf16.mxu0 0
    %1253 = vmatpush1.bf16.msra.mxu0 %v1153
    %1254 = vmatprep.subr.bf16.mxu0 0
    %1255 = vmatpush1.bf16.msra.mxu0 %v1154
    %1256 = vmatprep.subr.bf16.mxu0 0
    %1257 = vmatpush1.bf16.msra.mxu0 %v1155
    %1258 = vmatprep.subr.bf16.mxu0 0
    %1259 = vmatpush1.bf16.msra.mxu0 %v1156
    %1260 = vmatprep.subr.bf16.mxu0 0
    %1261 = vmatpush1.bf16.msra.mxu0 %v1157
    %1262 = vmatprep.subr.bf16.mxu0 0
    %1263 = vmatpush1.bf16.msra.mxu0 %v1158
    %1264 = vmatprep.mubr.bf16.mxu0 %v927
    %1265 = vmatmul.mubr.bf16.gmra.mrb[0].mxu0 %v926
    %v1266 = vpop.f32.mrb[0].mxu0
    %v1267 = vadd.f32 %v1226, %v1266
    %v1268 = vpop.f32.mrb[0].mxu0
    %v1269 = vpop.f32.mrb[0].mxu0
    %v1270 = vadd.f32 %v1229, %v1269
    %v1271 = vpop.f32.mrb[0].mxu0
    %1272 = vdwg.mxu0
    %1273 = vst [vmem:[#allocation11] sm:$0xff] %v1267
    %1274 = vst [vmem:[#allocation11 + $0x8] sm:$0xff] %v1270
    // Predicated region
    $region58: #{tpu_custom_call.1} parent=1 // pred_check
      _
    $region59: #{tpu_custom_call.1} parent=1 // pred_check_branch
      %1276 = sbr.rel (0) target = $region61
    $region60: #{tpu_custom_call.1} parent=1 // pred_region
      %s1278 = ssub.s32 256, 256
      %1279 = vsyncadd [#allocation4], %s1278
      %s1280 = sshll.u32 [#allocation11], 4
      %s1281 = int_to_ptr.vmem [resolvable:$true] %s1280
      %1286 = dma.vmem_to_hbm [thread:$0]  %s1281, 256, %s9, [#allocation4], 128, 128, 8
    $region61: #{tpu_custom_call.1} parent=1 // pred_fallthru
      _
    // Predicated region
    $region62: #{tpu_custom_call.1} parent=1 // pred_check
      _
    $region63: #{tpu_custom_call.1} parent=1 // pred_check_branch
      %1288 = sbr.rel (0) target = $region65
    $region64: #{tpu_custom_call.1} parent=1 // pred_region
      %1289 = dma.done [#allocation4], 256
    $region65: #{tpu_custom_call.1} parent=1 // pred_fallthru
      _
    %1290 = vsyncpa [#allocation3], 1
    %1291 = vsyncpa [#allocation6], 1
    %1292 = vsyncpa [#allocation9], 1
    %1293 = vsyncpa [#allocation4], 1

</llo_original>
